<compile_context>
chip_gen: v7x
topology: tpu7x:2x2x1
jax: 0.10.0
libtpu: 0.0.40
codegen_flags: <defaults>
</compile_context>

<pallas_src>
import jax
import jax.numpy as jnp
from jax.experimental import pallas as pl
from jax.experimental.pallas import tpu as pltpu


def _round_up(x, m):
    return ((x + m - 1) // m) * m


def _make_actor_kernel(H, Hp, Ap, compute_dtype):
    """Kernel for one (TB, ...) batch block. All gate slices are 128-lane
    aligned; the h carry term is kept in f32."""

    def kernel(x_ref, h_ref, wih_ref, whh_ref, wfc_ref, bias_ref,
               probs_ref, hnew_ref):
        x = x_ref[...].astype(compute_dtype)            # (TB, In)  bf16 for MXU
        h_prev = h_ref[...]                             # (TB, H)   f32, exact carry
        hb = h_prev.astype(compute_dtype)

        # Merged input->hidden / hidden->hidden gate matmuls (one MXU pass each).
        gi = jnp.dot(x, wih_ref[...], preferred_element_type=jnp.float32)   # (TB, 3Hp)
        gh = jnp.dot(hb, whh_ref[...], preferred_element_type=jnp.float32)  # (TB, 3Hp)

        b = bias_ref[...]                               # (8, Wb) f32, single resident block
        b_r = b[0:1, :Hp]
        b_z = b[1:2, :Hp]
        b_in = b[2:3, :Hp]
        b_hn = b[3:4, :Hp]
        b_fc = b[4:5, :Ap]

        # GRUCell (PyTorch semantics).
        r = jax.nn.sigmoid(gi[:, 0:Hp] + gh[:, 0:Hp] + b_r)
        z = jax.nn.sigmoid(gi[:, Hp:2 * Hp] + gh[:, Hp:2 * Hp] + b_z)
        n = jnp.tanh(gi[:, 2 * Hp:3 * Hp] + b_in + r * (gh[:, 2 * Hp:3 * Hp] + b_hn))

        z_h = z[:, :H]
        h_new = (1.0 - z_h) * n[:, :H] + z_h * h_prev   # (TB, H) f32, exact z*h term

        # FC + softmax(dim=1). Padded action lanes carry bias -1e30 -> zero mass,
        # so the (TB, Ap) probs store stays lane-dense.
        logits = jnp.dot(h_new.astype(compute_dtype), wfc_ref[...],
                         preferred_element_type=jnp.float32) + b_fc
        m = jnp.max(logits, axis=1, keepdims=True)
        e = jnp.exp(logits - m)
        probs = e / jnp.sum(e, axis=1, keepdims=True)   # exact normalization

        probs_ref[...] = probs.astype(probs_ref.dtype)  # (TB, Ap)
        hnew_ref[...] = h_new.astype(hnew_ref.dtype)    # (TB, H)

    return kernel


def prepare_actor_params(params, compute_dtype=jnp.bfloat16):
    """One-time weight prep: transpose, pad each gate block to 128 lanes, merge
    all parts into single W_ih / W_hh / W_fc matrices, pre-add the r/z biases,
    fold all biases into one resident array, cast MXU operands to bf16."""
    H = int(params["hidden_size"])
    In = params["w_ih"].shape[1]
    A = params["w_fc"].shape[0]
    Hp = _round_up(H, 128)
    Ap = _round_up(A, 128)
    Wb = max(Hp, Ap)

    def pad_gate_cols(w_t):              # (rows, 3H) -> (rows, 3Hp), per-gate pad
        rows = w_t.shape[0]
        out = jnp.zeros((rows, 3 * Hp), jnp.float32)
        for g in range(3):
            out = out.at[:, g * Hp:g * Hp + H].set(w_t[:, g * H:(g + 1) * H])
        return out

    wih = pad_gate_cols(params["w_ih"].T).astype(compute_dtype)   # (In, 3Hp)
    whh = pad_gate_cols(params["w_hh"].T).astype(compute_dtype)   # (H, 3Hp)
    wfc = (jnp.zeros((H, Ap), jnp.float32)
           .at[:, :A].set(params["w_fc"].T)).astype(compute_dtype)  # (H, Ap)

    # Single bias block: rows 0..4 = [b_r, b_z, b_in_n, b_hn_n, b_fc].
    # Padded gate columns have zero weights/biases but are discarded by the
    # [:, :H] slice, so no padding-zero invariant is required for h.
    b_ih, b_hh = params["b_ih"], params["b_hh"]
    bias = jnp.zeros((8, Wb), jnp.float32)
    bias = bias.at[0, :H].set(b_ih[0:H] + b_hh[0:H])               # r (pre-added)
    bias = bias.at[1, :H].set(b_ih[H:2 * H] + b_hh[H:2 * H])       # z (pre-added)
    bias = bias.at[2, :H].set(b_ih[2 * H:3 * H])                   # n, input part
    bias = bias.at[3, :H].set(b_hh[2 * H:3 * H])                   # n, hidden part
    bias = bias.at[4, :Ap].set(-1e30)                              # padded logits -> -inf
    bias = bias.at[4, :A].set(params["b_fc"])

    return {
        "H": H, "Hp": Hp, "A": A, "Ap": Ap, "In": In, "Wb": Wb,
        "compute_dtype": compute_dtype,
        "wih": wih, "whh": whh, "wfc": wfc, "bias": bias,
    }


def actor_forward(s_parts, h_parts, prep):
    """Pallas equivalent of Actor.forward(s, h) with discrete=True.
    Returns (action probabilities, new hidden state)."""
    H, Hp, A, Ap, In = prep["H"], prep["Hp"], prep["A"], prep["Ap"], prep["In"]
    Wb = prep["Wb"]

    # The module's own K.cat(list(s), dim=1) / K.cat(list(h), dim=1); no pad,
    # no dtype cast here (cast happens inside the kernel).
    x = jnp.concatenate([p.astype(jnp.float32) for p in s_parts], axis=1)
    h = jnp.concatenate([p.astype(jnp.float32) for p in h_parts], axis=1)
    assert x.shape[1] == In and h.shape[1] == H
    B = x.shape[0]

    # Batch tiling policy (see header comment).
    if B <= 128:
        TB, Bp = B, B                      # single block, zero batch padding
    elif B <= 512:
        TB = _round_up((B + 1) // 2, 8)    # 2 blocks -> both v7x TensorCores
        Bp = 2 * TB
    else:
        TB = 256                           # amortize per-grid-step overhead
        Bp = _round_up(B, TB)
    nb = Bp // TB
    if Bp != B:
        x = jnp.pad(x, ((0, Bp - B), (0, 0)))
        h = jnp.pad(h, ((0, Bp - B), (0, 0)))

    kernel = _make_actor_kernel(H, Hp, Ap, prep["compute_dtype"])

    def batch_spec(width):
        return pl.BlockSpec((TB, width), lambda i: (i, 0))

    def resident_spec(arr):                # constant index_map -> VMEM-resident
        return pl.BlockSpec(arr.shape, lambda i: (0, 0))

    in_specs = [batch_spec(In), batch_spec(H),
                resident_spec(prep["wih"]), resident_spec(prep["whh"]),
                resident_spec(prep["wfc"]), resident_spec(prep["bias"])]
    out_specs = (pl.BlockSpec((TB, Ap), lambda i: (i, 0)),
                 pl.BlockSpec((TB, H), lambda i: (i, 0)))

    # Advisory cost estimate so XLA can schedule surrounding ops.
    flops = 2 * Bp * (In * 3 * Hp + H * 3 * Hp + H * Ap) + 12 * Bp * Hp
    transcendentals = Bp * (3 * Hp + Ap)
    bytes_accessed = (4 * Bp * (In + 2 * H + Ap)
                      + 2 * (In * 3 * Hp + H * 3 * Hp + H * Ap) + 4 * 8 * Wb)
    cost = pl.CostEstimate(flops=int(flops),
                           transcendentals=int(transcendentals),
                           bytes_accessed=int(bytes_accessed))

    # Explicit VMEM budget only when the per-block footprint grows (matters for
    # big TB on v7x's 64 MiB VMEM); otherwise use the default scoped limit.
    vmem_est = (2 * 4 * TB * (In + 2 * H + Ap)                    # I/O blocks x2 bufs
                + 2 * 2 * (In * 3 * Hp + H * 3 * Hp + H * Ap)     # bf16 weights x2 bufs
                + 2 * 4 * 8 * Wb                                  # bias block
                + 4 * TB * (8 * Hp + 2 * Ap))                     # live f32 temporaries
    cp_kwargs = dict(dimension_semantics=("parallel",))
    if vmem_est > 12 * 1024 * 1024:
        cp_kwargs["vmem_limit_bytes"] = int(min(2 * vmem_est, 64 * 1024 * 1024))

    probs_p, hnew_p = pl.pallas_call(
        kernel,
        out_shape=(jax.ShapeDtypeStruct((Bp, Ap), jnp.float32),
                   jax.ShapeDtypeStruct((Bp, H), jnp.float32)),
        grid=(nb,),
        in_specs=in_specs,
        out_specs=out_specs,
        cost_estimate=cost,
        compiler_params=pltpu.CompilerParams(**cp_kwargs),
    )(x, h, prep["wih"], prep["whh"], prep["wfc"], prep["bias"])

    # Slice padding off outside the kernel (kernel stores stay dense).
    return probs_p[:B, :A], hnew_p[:B]


def init_actor_params(key, input_size, hidden_size, action_space):
    """Deterministic synthetic init mirroring nn.GRUCell / nn.Linear shapes."""
    ks = jax.random.split(key, 6)
    bound = 1.0 / jnp.sqrt(hidden_size)
    u = lambda k, shape: jax.random.uniform(k, shape, jnp.float32, -bound, bound)
    return {
        "hidden_size": hidden_size,
        "w_ih": u(ks[0], (3 * hidden_size, input_size)),
        "w_hh": u(ks[1], (3 * hidden_size, hidden_size)),
        "b_ih": u(ks[2], (3 * hidden_size,)),
        "b_hh": u(ks[3], (3 * hidden_size,)),
        "w_fc": u(ks[4], (action_space, hidden_size)),
        "b_fc": u(ks[5], (action_space,)),
    }


def _reference_forward(s_parts, h_parts, params):
    """Pure-JAX f32 reference (PyTorch nn.GRUCell + Linear + softmax)."""
    x = jnp.concatenate(list(s_parts), axis=1)
    h = jnp.concatenate(list(h_parts), axis=1)
    H = params["hidden_size"]
    gi = x @ params["w_ih"].T + params["b_ih"]
    gh = h @ params["w_hh"].T + params["b_hh"]
    r = jax.nn.sigmoid(gi[:, :H] + gh[:, :H])
    z = jax.nn.sigmoid(gi[:, H:2 * H] + gh[:, H:2 * H])
    n = jnp.tanh(gi[:, 2 * H:] + r * gh[:, 2 * H:])
    h_new = (1.0 - z) * n + z * h
    logits = h_new @ params["w_fc"].T + params["b_fc"]
    return jax.nn.softmax(logits, axis=1), h_new


if __name__ == "__main__":
    key = jax.random.PRNGKey(0)
    k_p, k_s1, k_s2, k_h1, k_h2 = jax.random.split(key, 5)

    batch = 4
    obs_per_agent = 8                     # two observation chunks -> input_size = 16
    input_size = 2 * obs_per_agent
    hidden_size = 64                      # Actor hard-codes hidden_size = 64
    action_space = 5

    params = init_actor_params(k_p, input_size, hidden_size, action_space)

    # s and h are lists of tensors (as in the PyTorch forward).
    s_parts = (jax.random.normal(k_s1, (batch, obs_per_agent), jnp.float32),
               jax.random.normal(k_s2, (batch, obs_per_agent), jnp.float32))
    h_parts = (jax.random.normal(k_h1, (batch, hidden_size // 2), jnp.float32),
               jax.random.normal(k_h2, (batch, hidden_size // 2), jnp.float32))

    # One-time weight prep (hoisted out of the per-step forward).
    prep = prepare_actor_params(params, compute_dtype=jnp.bfloat16)

    probs, h_new = actor_forward(s_parts, h_parts, prep)
    jax.block_until_ready((probs, h_new))

    ref_probs, ref_h = _reference_forward(s_parts, h_parts, params)
    assert probs.shape == (batch, action_space)
    assert h_new.shape == (batch, hidden_size)
    # bf16 MXU inputs -> relaxed tolerances vs the f32 reference.
    assert jnp.allclose(h_new, ref_h, atol=3e-2, rtol=3e-2), \
        f"h max err {jnp.max(jnp.abs(h_new - ref_h))}"
    assert jnp.allclose(probs, ref_probs, atol=2e-2, rtol=2e-2), \
        f"probs max err {jnp.max(jnp.abs(probs - ref_probs))}"
    # Exact softmax normalization in-kernel -> tight row-sum check.
    assert jnp.allclose(jnp.sum(probs, axis=1), 1.0, atol=1e-4)

    print("KERNEL_OK")
</pallas_src>

<mosaic_0001>
module attributes {stable_mosaic.version = 11 : i64} {
  func.func @kernel(%arg0: i32, %arg1: memref<4x16xf32, #tpu.memory_space<vmem>>, %arg2: memref<4x64xf32, #tpu.memory_space<vmem>>, %arg3: memref<16x384xbf16, #tpu.memory_space<vmem>>, %arg4: memref<64x384xbf16, #tpu.memory_space<vmem>>, %arg5: memref<64x128xbf16, #tpu.memory_space<vmem>>, %arg6: memref<8x128xf32, #tpu.memory_space<vmem>>, %arg7: memref<4x128xf32, #tpu.memory_space<vmem>>, %arg8: memref<4x64xf32, #tpu.memory_space<vmem>>) attributes {dimension_semantics = [#tpu.dimension_semantics<parallel>], iteration_bounds = array<i64: 1>, scalar_prefetch = 0 : i64, scratch_operands = 0 : i64, tpu.core_type = #tpu.core_type<tc>, window_params = [{transform_indices = @transform_0, window_bounds = array<i64: 4, 16>}, {transform_indices = @transform_1, window_bounds = array<i64: 4, 64>}, {pipeline_mode = #tpu.pipeline_mode<synchronous>, transform_indices = @transform_2, window_bounds = array<i64: 16, 384>}, {pipeline_mode = #tpu.pipeline_mode<synchronous>, transform_indices = @transform_3, window_bounds = array<i64: 64, 384>}, {pipeline_mode = #tpu.pipeline_mode<synchronous>, transform_indices = @transform_4, window_bounds = array<i64: 64, 128>}, {pipeline_mode = #tpu.pipeline_mode<synchronous>, transform_indices = @transform_5, window_bounds = array<i64: 8, 128>}, {transform_indices = @transform_6, window_bounds = array<i64: 4, 128>}, {transform_indices = @transform_7, window_bounds = array<i64: 4, 64>}]} {
    %c0 = arith.constant 0 : index
    %c0_0 = arith.constant 0 : index
    %0 = vector.load %arg1[%c0, %c0_0] : memref<4x16xf32, #tpu.memory_space<vmem>>, vector<4x16xf32>
    %1 = arith.truncf %0 : vector<4x16xf32> to vector<4x16xbf16>
    %c0_1 = arith.constant 0 : index
    %c0_2 = arith.constant 0 : index
    %2 = vector.load %arg2[%c0_1, %c0_2] : memref<4x64xf32, #tpu.memory_space<vmem>>, vector<4x64xf32>
    %3 = arith.truncf %2 : vector<4x64xf32> to vector<4x64xbf16>
    %c0_3 = arith.constant 0 : index
    %c0_4 = arith.constant 0 : index
    %4 = vector.load %arg3[%c0_3, %c0_4] : memref<16x384xbf16, #tpu.memory_space<vmem>>, vector<16x384xbf16>
    %cst = arith.constant dense<0.000000e+00> : vector<4x384xf32>
    %5 = tpu.matmul %1, %4, %cst {dimension_numbers = #tpu.dot_dimension_numbers<[1], [0], [0], [1], [0, 0, 1, 1], [], []>} : vector<4x16xbf16>, vector<16x384xbf16>, vector<4x384xf32> -> vector<4x384xf32>
    %c0_5 = arith.constant 0 : index
    %c0_6 = arith.constant 0 : index
    %6 = vector.load %arg4[%c0_5, %c0_6] : memref<64x384xbf16, #tpu.memory_space<vmem>>, vector<64x384xbf16>
    %cst_7 = arith.constant dense<0.000000e+00> : vector<4x384xf32>
    %7 = tpu.matmul %3, %6, %cst_7 {dimension_numbers = #tpu.dot_dimension_numbers<[1], [0], [0], [1], [0, 0, 1, 1], [], []>} : vector<4x64xbf16>, vector<64x384xbf16>, vector<4x384xf32> -> vector<4x384xf32>
    %c0_8 = arith.constant 0 : index
    %c0_9 = arith.constant 0 : index
    %8 = vector.load %arg6[%c0_8, %c0_9] : memref<8x128xf32, #tpu.memory_space<vmem>>, vector<8x128xf32>
    %9 = vector.extract_strided_slice %8 {offsets = [0, 0], sizes = [1, 128], strides = [1, 1]} : vector<8x128xf32> to vector<1x128xf32>
    %10 = vector.extract_strided_slice %8 {offsets = [1, 0], sizes = [1, 128], strides = [1, 1]} : vector<8x128xf32> to vector<1x128xf32>
    %11 = vector.extract_strided_slice %8 {offsets = [2, 0], sizes = [1, 128], strides = [1, 1]} : vector<8x128xf32> to vector<1x128xf32>
    %12 = vector.extract_strided_slice %8 {offsets = [3, 0], sizes = [1, 128], strides = [1, 1]} : vector<8x128xf32> to vector<1x128xf32>
    %13 = vector.extract_strided_slice %8 {offsets = [4, 0], sizes = [1, 128], strides = [1, 1]} : vector<8x128xf32> to vector<1x128xf32>
    %14 = vector.extract_strided_slice %5 {offsets = [0, 0], sizes = [4, 128], strides = [1, 1]} : vector<4x384xf32> to vector<4x128xf32>
    %15 = vector.extract_strided_slice %7 {offsets = [0, 0], sizes = [4, 128], strides = [1, 1]} : vector<4x384xf32> to vector<4x128xf32>
    %16 = arith.addf %14, %15 : vector<4x128xf32>
    %17 = vector.broadcast %9 : vector<1x128xf32> to vector<4x128xf32>
    %18 = arith.addf %16, %17 : vector<4x128xf32>
    %19 = arith.negf %18 : vector<4x128xf32>
    %20 = math.exp %19 : vector<4x128xf32>
    %cst_10 = arith.constant 1.000000e+00 : f32
    %21 = vector.broadcast %cst_10 : f32 to vector<4x128xf32>
    %22 = arith.addf %21, %20 : vector<4x128xf32>
    %23 = arith.divf %21, %22 : vector<4x128xf32>
    %24 = vector.extract_strided_slice %5 {offsets = [0, 128], sizes = [4, 128], strides = [1, 1]} : vector<4x384xf32> to vector<4x128xf32>
    %25 = vector.extract_strided_slice %7 {offsets = [0, 128], sizes = [4, 128], strides = [1, 1]} : vector<4x384xf32> to vector<4x128xf32>
    %26 = arith.addf %24, %25 : vector<4x128xf32>
    %27 = vector.broadcast %10 : vector<1x128xf32> to vector<4x128xf32>
    %28 = arith.addf %26, %27 : vector<4x128xf32>
    %29 = arith.negf %28 : vector<4x128xf32>
    %30 = math.exp %29 : vector<4x128xf32>
    %cst_11 = arith.constant 1.000000e+00 : f32
    %31 = vector.broadcast %cst_11 : f32 to vector<4x128xf32>
    %32 = arith.addf %31, %30 : vector<4x128xf32>
    %33 = arith.divf %31, %32 : vector<4x128xf32>
    %34 = vector.extract_strided_slice %5 {offsets = [0, 256], sizes = [4, 128], strides = [1, 1]} : vector<4x384xf32> to vector<4x128xf32>
    %35 = vector.broadcast %11 : vector<1x128xf32> to vector<4x128xf32>
    %36 = arith.addf %34, %35 : vector<4x128xf32>
    %37 = vector.extract_strided_slice %7 {offsets = [0, 256], sizes = [4, 128], strides = [1, 1]} : vector<4x384xf32> to vector<4x128xf32>
    %38 = vector.broadcast %12 : vector<1x128xf32> to vector<4x128xf32>
    %39 = arith.addf %37, %38 : vector<4x128xf32>
    %40 = arith.mulf %23, %39 : vector<4x128xf32>
    %41 = arith.addf %36, %40 : vector<4x128xf32>
    %42 = math.tanh %41 : vector<4x128xf32>
    %43 = vector.extract_strided_slice %33 {offsets = [0, 0], sizes = [4, 64], strides = [1, 1]} : vector<4x128xf32> to vector<4x64xf32>
    %cst_12 = arith.constant 1.000000e+00 : f32
    %44 = vector.broadcast %cst_12 : f32 to vector<4x64xf32>
    %45 = arith.subf %44, %43 : vector<4x64xf32>
    %46 = vector.extract_strided_slice %42 {offsets = [0, 0], sizes = [4, 64], strides = [1, 1]} : vector<4x128xf32> to vector<4x64xf32>
    %47 = arith.mulf %45, %46 : vector<4x64xf32>
    %48 = arith.mulf %43, %2 : vector<4x64xf32>
    %49 = arith.addf %47, %48 : vector<4x64xf32>
    %50 = arith.truncf %49 : vector<4x64xf32> to vector<4x64xbf16>
    %c0_13 = arith.constant 0 : index
    %c0_14 = arith.constant 0 : index
    %51 = vector.load %arg5[%c0_13, %c0_14] : memref<64x128xbf16, #tpu.memory_space<vmem>>, vector<64x128xbf16>
    %cst_15 = arith.constant dense<0.000000e+00> : vector<4x128xf32>
    %52 = tpu.matmul %50, %51, %cst_15 {dimension_numbers = #tpu.dot_dimension_numbers<[1], [0], [0], [1], [0, 0, 1, 1], [], []>} : vector<4x64xbf16>, vector<64x128xbf16>, vector<4x128xf32> -> vector<4x128xf32>
    %53 = vector.broadcast %13 : vector<1x128xf32> to vector<4x128xf32>
    %54 = arith.addf %52, %53 : vector<4x128xf32>
    %cst_16 = arith.constant dense<0xFF800000> : vector<4xf32>
    %55 = vector.multi_reduction <maximumf>, %54, %cst_16 [1] : vector<4x128xf32> to vector<4xf32>
    %56 = vector.shape_cast %55 : vector<4xf32> to vector<4x1xf32>
    %57 = vector.broadcast %56 : vector<4x1xf32> to vector<4x128xf32>
    %58 = arith.subf %54, %57 : vector<4x128xf32>
    %59 = math.exp %58 : vector<4x128xf32>
    %cst_17 = arith.constant dense<0.000000e+00> : vector<4xf32>
    %60 = vector.multi_reduction <add>, %59, %cst_17 [1] : vector<4x128xf32> to vector<4xf32>
    %61 = vector.shape_cast %60 : vector<4xf32> to vector<4x1xf32>
    %62 = vector.broadcast %61 : vector<4x1xf32> to vector<4x128xf32>
    %63 = arith.divf %59, %62 : vector<4x128xf32>
    %c0_18 = arith.constant 0 : index
    %c0_19 = arith.constant 0 : index
    %64 = vector.load %arg7[%c0_18, %c0_19] : memref<4x128xf32, #tpu.memory_space<vmem>>, vector<4x128xf32>
    tpu.vector_store %arg7[%c0_18, %c0_19], %63 {strides = array<i32>} : memref<4x128xf32, #tpu.memory_space<vmem>>, vector<4x128xf32>,
    %c0_20 = arith.constant 0 : index
    %c0_21 = arith.constant 0 : index
    %65 = vector.load %arg8[%c0_20, %c0_21] : memref<4x64xf32, #tpu.memory_space<vmem>>, vector<4x64xf32>
    tpu.vector_store %arg8[%c0_20, %c0_21], %49 {strides = array<i32>} : memref<4x64xf32, #tpu.memory_space<vmem>>, vector<4x64xf32>,
    return
  }
  func.func @transform_0(%arg0: i32) -> (i32, i32) {
    %c0_i32 = arith.constant 0 : i32
    %c0_i32_0 = arith.constant 0 : i32
    return %arg0, %c0_i32 : i32, i32
  }
  func.func @transform_1(%arg0: i32) -> (i32, i32) {
    %c0_i32 = arith.constant 0 : i32
    %c0_i32_0 = arith.constant 0 : i32
    return %arg0, %c0_i32 : i32, i32
  }
  func.func @transform_2(%arg0: i32) -> (i32, i32) {
    %c0_i32 = arith.constant 0 : i32
    %c0_i32_0 = arith.constant 0 : i32
    %c0_i32_1 = arith.constant 0 : i32
    return %c0_i32, %c0_i32_0 : i32, i32
  }
  func.func @transform_3(%arg0: i32) -> (i32, i32) {
    %c0_i32 = arith.constant 0 : i32
    %c0_i32_0 = arith.constant 0 : i32
    %c0_i32_1 = arith.constant 0 : i32
    return %c0_i32, %c0_i32_0 : i32, i32
  }
  func.func @transform_4(%arg0: i32) -> (i32, i32) {
    %c0_i32 = arith.constant 0 : i32
    %c0_i32_0 = arith.constant 0 : i32
    %c0_i32_1 = arith.constant 0 : i32
    return %c0_i32, %c0_i32_0 : i32, i32
  }
  func.func @transform_5(%arg0: i32) -> (i32, i32) {
    %c0_i32 = arith.constant 0 : i32
    %c0_i32_0 = arith.constant 0 : i32
    %c0_i32_1 = arith.constant 0 : i32
    return %c0_i32, %c0_i32_0 : i32, i32
  }
  func.func @transform_6(%arg0: i32) -> (i32, i32) {
    %c0_i32 = arith.constant 0 : i32
    %c0_i32_0 = arith.constant 0 : i32
    return %arg0, %c0_i32 : i32, i32
  }
  func.func @transform_7(%arg0: i32) -> (i32, i32) {
    %c0_i32 = arith.constant 0 : i32
    %c0_i32_0 = arith.constant 0 : i32
    return %arg0, %c0_i32 : i32, i32
  }
}

</mosaic_0001>

<llo_original>
// kernel: tpu_custom_call.1
$region0: #{tpu_custom_call.1}
  #allocation0 [shape = 'u32[]', space=smem, size = 0x4, offset = 0x4, fixed_abs, tag = 'smem constant byte address 0x4 - core index']
  #allocation1 [shape = 'u32[144,128]{1,0:T(1,128)}', space=vmem, size = 0x12000, scoped, tag = 'internal scratch']
  %s0 = inlined_call_operand.hbm [shape: f32[4,16], index: 0, kind: input, shape index: {}]
  %s1 = inlined_call_operand.hbm [shape: f32[4,64], index: 1, kind: input, shape index: {}]
  %s2 = inlined_call_operand.hbm [shape: bf16[16,384], index: 2, kind: input, shape index: {}]
  %s3 = inlined_call_operand.hbm [shape: bf16[64,384], index: 3, kind: input, shape index: {}]
  %s4 = inlined_call_operand.hbm [shape: bf16[64,128], index: 4, kind: input, shape index: {}]
  %s5 = inlined_call_operand.vmem [shape: f32[8,128], index: 5, kind: input, shape index: {}]
  %s6 = inlined_call_operand.hbm [shape: f32[4,128], index: 6, kind: output, shape index: {0}]
  %s7 = inlined_call_operand.hbm [shape: f32[4,64], index: 7, kind: output, shape index: {1}]
  %8 = xla_tuple %s6, %s7
  %s9 = sld [smem:[#allocation0]]
  $region62: #{tpu_custom_call.1} parent=0
    _
  %s11 = ssub.s32 1, %s9
  %s12 = scalar_select 0, %s11, %s9
  $region1: #{tpu_custom_call.1} parent=0
    #allocation2 [shape = 'u8[2048]{0}', space=vmem, size = 0x800, scoped, tag = 'input window, operand 0, single buffered']
    #allocation3 [shape = 's32[1]{0}', space=sflag, size = 0x4, scoped, tag = 'scoped memory for tpu_custom_call.1']
    #allocation4 [shape = 's32[1]{0}', space=sflag, size = 0x4, scoped, tag = 'scoped memory for tpu_custom_call.1']
    #allocation5 [shape = 'u8[2048]{0}', space=vmem, size = 0x800, scoped, tag = 'input window, operand 1, single buffered']
    #allocation6 [shape = 's32[1]{0}', space=sflag, size = 0x4, scoped, tag = 'scoped memory for tpu_custom_call.1']
    #allocation7 [shape = 'u8[12288]{0}', space=vmem, size = 0x3000, scoped, tag = 'input window, operand 2, single buffered']
    #allocation8 [shape = 'u8[49152]{0}', space=vmem, size = 0xc000, scoped, tag = 'input window, operand 3, single buffered']
    #allocation9 [shape = 's32[1]{0}', space=sflag, size = 0x4, scoped, tag = 'scoped memory for tpu_custom_call.1']
    #allocation10 [shape = 'u8[16384]{0}', space=vmem, size = 0x4000, scoped, tag = 'input window, operand 4, single buffered']
    #allocation11 [shape = 'u8[2048]{0}', space=vmem, size = 0x800, scoped, tag = 'output window, operand 0, single buffered']
    #allocation12 [shape = 'u8[2048]{0}', space=vmem, size = 0x800, scoped, tag = 'output window, operand 1, single buffered']
    #allocation13 [shape = 's32[1]{0}', space=sflag, size = 0x4, scoped, tag = 'scoped memory for tpu_custom_call.1']
    %13 = vsyncpa [#allocation3], 0
    %14 = vsyncpa [#allocation6], 0
    %15 = vsyncpa [#allocation9], 0
    %16 = vsyncpa [#allocation4], 0
    %17 = vsyncpa [#allocation13], 0
    // Predicated region
    $region2: #{tpu_custom_call.1} parent=1 // pred_check
      _
    $region3: #{tpu_custom_call.1} parent=1 // pred_check_branch
      %19 = sbr.rel (0) target = $region5
    $region4: #{tpu_custom_call.1} parent=1 // pred_region
      %s21 = ssub.s32 64, 64
      %22 = vsyncadd [#allocation3], %s21
      %s24 = sshll.u32 [#allocation2], 4
      %s25 = int_to_ptr.vmem [resolvable:$true] %s24
      %27 = dma.hbm_to_vmem [thread:$0]  %s0, 64, %s25, [#allocation3]
    $region5: #{tpu_custom_call.1} parent=1 // pred_fallthru
      _
    // Predicated region
    $region6: #{tpu_custom_call.1} parent=1 // pred_check
      _
    $region7: #{tpu_custom_call.1} parent=1 // pred_check_branch
      %29 = sbr.rel (0) target = $region9
    $region8: #{tpu_custom_call.1} parent=1 // pred_region
      %s31 = ssub.s32 64, 64
      %32 = vsyncadd [#allocation6], %s31
      %s34 = sshll.u32 [#allocation5], 4
      %s35 = int_to_ptr.vmem [resolvable:$true] %s34
      %37 = dma.hbm_to_vmem [thread:$0]  %s1, 64, %s35, [#allocation6]
    $region9: #{tpu_custom_call.1} parent=1 // pred_fallthru
      _
    // Predicated region
    $region10: #{tpu_custom_call.1} parent=1 // pred_check
      _
    $region11: #{tpu_custom_call.1} parent=1 // pred_check_branch
      %39 = sbr.rel (0) target = $region13
    $region12: #{tpu_custom_call.1} parent=1 // pred_region
      %s41 = ssub.s32 384, 384
      %42 = vsyncadd [#allocation6], %s41
      %s43 = sshll.u32 [#allocation7], 4
      %s44 = int_to_ptr.vmem [resolvable:$true] %s43
      %49 = dma.hbm_to_vmem [thread:$0]  %s2, 384, %s44, [#allocation6], 192, 192, 12
    $region13: #{tpu_custom_call.1} parent=1 // pred_fallthru
      _
    // Predicated region
    $region14: #{tpu_custom_call.1} parent=1 // pred_check
      _
    $region15: #{tpu_custom_call.1} parent=1 // pred_check_branch
      %51 = sbr.rel (0) target = $region17
    $region16: #{tpu_custom_call.1} parent=1 // pred_region
      %s53 = ssub.s32 1536, 1536
      %54 = vsyncadd [#allocation9], %s53
      %s55 = sshll.u32 [#allocation8], 4
      %s56 = int_to_ptr.vmem [resolvable:$true] %s55
      %61 = dma.hbm_to_vmem [thread:$0]  %s3, 1536, %s56, [#allocation9], 192, 192, 12
    $region17: #{tpu_custom_call.1} parent=1 // pred_fallthru
      _
    // Predicated region
    $region18: #{tpu_custom_call.1} parent=1 // pred_check
      _
    $region19: #{tpu_custom_call.1} parent=1 // pred_check_branch
      %63 = sbr.rel (0) target = $region21
    $region20: #{tpu_custom_call.1} parent=1 // pred_region
      %s65 = ssub.s32 512, 512
      %66 = vsyncadd [#allocation9], %s65
      %s67 = sshll.u32 [#allocation10], 4
      %s68 = int_to_ptr.vmem [resolvable:$true] %s67
      %73 = dma.hbm_to_vmem [thread:$0]  %s4, 512, %s68, [#allocation9], 64, 64, 4
    $region21: #{tpu_custom_call.1} parent=1 // pred_fallthru
      _
    // Predicated region
    $region22: #{tpu_custom_call.1} parent=1 // pred_check
      _
    $region23: #{tpu_custom_call.1} parent=1 // pred_check_branch
      %75 = sbr.rel (0) target = $region25
    $region24: #{tpu_custom_call.1} parent=1 // pred_region
      _
    $region25: #{tpu_custom_call.1} parent=1 // pred_fallthru
      _
    // Predicated region
    $region26: #{tpu_custom_call.1} parent=1 // pred_check
      _
    $region27: #{tpu_custom_call.1} parent=1 // pred_check_branch
      %77 = sbr.rel (0) target = $region29
    $region28: #{tpu_custom_call.1} parent=1 // pred_region
      %78 = dma.done [#allocation3], 64
    $region29: #{tpu_custom_call.1} parent=1 // pred_fallthru
      _
    // Predicated region
    $region30: #{tpu_custom_call.1} parent=1 // pred_check
      _
    $region31: #{tpu_custom_call.1} parent=1 // pred_check_branch
      %80 = sbr.rel (0) target = $region33
    $region32: #{tpu_custom_call.1} parent=1 // pred_region
      %81 = dma.done [#allocation6], 64
    $region33: #{tpu_custom_call.1} parent=1 // pred_fallthru
      _
    // Predicated region
    $region34: #{tpu_custom_call.1} parent=1 // pred_check
      _
    $region35: #{tpu_custom_call.1} parent=1 // pred_check_branch
      %83 = sbr.rel (0) target = $region37
    $region36: #{tpu_custom_call.1} parent=1 // pred_region
      %84 = dma.done [#allocation6], 384
    $region37: #{tpu_custom_call.1} parent=1 // pred_fallthru
      _
    // Predicated region
    $region38: #{tpu_custom_call.1} parent=1 // pred_check
      _
    $region39: #{tpu_custom_call.1} parent=1 // pred_check_branch
      %86 = sbr.rel (0) target = $region41
    $region40: #{tpu_custom_call.1} parent=1 // pred_region
      %87 = dma.done [#allocation9], 1536
    $region41: #{tpu_custom_call.1} parent=1 // pred_fallthru
      _
    // Predicated region
    $region42: #{tpu_custom_call.1} parent=1 // pred_check
      _
    $region43: #{tpu_custom_call.1} parent=1 // pred_check_branch
      %89 = sbr.rel (0) target = $region45
    $region44: #{tpu_custom_call.1} parent=1 // pred_region
      %90 = dma.done [#allocation9], 512
    $region45: #{tpu_custom_call.1} parent=1 // pred_fallthru
      _
    %v92 = vld [vmem:[#allocation2] sm:$0xf]
    %v93 = vpack.c.bf16 %v92, %v92
    %v94 = vld [vmem:[#allocation5] sm:$0xf]
    %v95 = vpack.c.bf16 %v94, %v94
    %v96 = vld [vmem:[#allocation7] sm:$0xff]
    %v97 = vld [vmem:[#allocation7 + $0x8] sm:$0xf]
    %v98 = vld [vmem:[#allocation7 + $0xc] sm:$0xff]
    %v99 = vld [vmem:[#allocation7 + $0x14] sm:$0xf]
    %v104 = vunpack.c.l.b16 %v96
    %v105 = vunpack.c.h.b16 %v96
    %v106 = vunpack.c.l.b16 %v97
    %v107 = vunpack.c.l.b16 %v98
    %v108 = vunpack.c.h.b16 %v98
    %v109 = vunpack.c.l.b16 %v99
    %v110 = vpack.c.b16 %v107, %v104
    %v111 = vpack.c.b16 %v108, %v105
    %v112 = vpack.c.b16 %v109, %v106
    %vm116 = vcmask 130048
    %v118 = vsel %vm116, %v93, 0
    %120 = vmatprep.subr.bf16.mxu0 %v111
    %121 = vmatpush1.bf16.msra.mxu0 %v110
    %122 = vmatprep.subr.bf16.mxu0 0
    %123 = vmatpush1.bf16.msra.mxu0 0
    %124 = vmatprep.subr.bf16.mxu0 0
    %125 = vmatpush1.bf16.msra.mxu0 0
    %126 = vmatprep.subr.bf16.mxu0 0
    %127 = vmatpush1.bf16.msra.mxu0 0
    %128 = vmatprep.subr.bf16.mxu0 0
    %129 = vmatpush1.bf16.msra.mxu0 0
    %130 = vmatprep.subr.bf16.mxu0 0
    %131 = vmatpush1.bf16.msra.mxu0 0
    %132 = vmatprep.subr.bf16.mxu0 0
    %133 = vmatpush1.bf16.msra.mxu0 0
    %134 = vmatprep.subr.bf16.mxu0 0
    %135 = vmatpush1.bf16.msra.mxu0 0
    %136 = vmatprep.subr.bf16.mxu0 0
    %137 = vmatpush1.bf16.msra.mxu0 0
    %138 = vmatprep.subr.bf16.mxu0 0
    %139 = vmatpush1.bf16.msra.mxu0 0
    %140 = vmatprep.subr.bf16.mxu0 0
    %141 = vmatpush1.bf16.msra.mxu0 0
    %142 = vmatprep.subr.bf16.mxu0 0
    %143 = vmatpush1.bf16.msra.mxu0 0
    %144 = vmatprep.subr.bf16.mxu0 0
    %145 = vmatpush1.bf16.msra.mxu0 0
    %146 = vmatprep.subr.bf16.mxu0 0
    %147 = vmatpush1.bf16.msra.mxu0 0
    %148 = vmatprep.subr.bf16.mxu0 0
    %149 = vmatpush1.bf16.msra.mxu0 0
    %150 = vmatprep.subr.bf16.mxu0 0
    %151 = vmatpush1.bf16.msra.mxu0 0
    %152 = vmatprep.mubr.bf16.mxu0 0
    %153 = vmatmul.mubr.bf16.gmra.mrb[0].mxu0 %v118
    %v154 = vpop.f32.mrb[0].mxu0
    %v155 = vadd.f32 0.0, %v154
    %v156 = vpop.f32.mrb[0].mxu0
    %v157 = vadd.f32 0.0, %v156
    %v158 = vpop.f32.mrb[0].mxu0
    %v159 = vpop.f32.mrb[0].mxu0
    %160 = vdwg.mxu0
    %161 = vmatprep.subr.bf16.mxu0 0
    %162 = vmatpush1.bf16.msra.mxu0 %v112
    %163 = vmatprep.subr.bf16.mxu0 0
    %164 = vmatpush1.bf16.msra.mxu0 0
    %165 = vmatprep.subr.bf16.mxu0 0
    %166 = vmatpush1.bf16.msra.mxu0 0
    %167 = vmatprep.subr.bf16.mxu0 0
    %168 = vmatpush1.bf16.msra.mxu0 0
    %169 = vmatprep.subr.bf16.mxu0 0
    %170 = vmatpush1.bf16.msra.mxu0 0
    %171 = vmatprep.subr.bf16.mxu0 0
    %172 = vmatpush1.bf16.msra.mxu0 0
    %173 = vmatprep.subr.bf16.mxu0 0
    %174 = vmatpush1.bf16.msra.mxu0 0
    %175 = vmatprep.subr.bf16.mxu0 0
    %176 = vmatpush1.bf16.msra.mxu0 0
    %177 = vmatprep.subr.bf16.mxu0 0
    %178 = vmatpush1.bf16.msra.mxu0 0
    %179 = vmatprep.subr.bf16.mxu0 0
    %180 = vmatpush1.bf16.msra.mxu0 0
    %181 = vmatprep.subr.bf16.mxu0 0
    %182 = vmatpush1.bf16.msra.mxu0 0
    %183 = vmatprep.subr.bf16.mxu0 0
    %184 = vmatpush1.bf16.msra.mxu0 0
    %185 = vmatprep.subr.bf16.mxu0 0
    %186 = vmatpush1.bf16.msra.mxu0 0
    %187 = vmatprep.subr.bf16.mxu0 0
    %188 = vmatpush1.bf16.msra.mxu0 0
    %189 = vmatprep.subr.bf16.mxu0 0
    %190 = vmatpush1.bf16.msra.mxu0 0
    %191 = vmatprep.subr.bf16.mxu0 0
    %192 = vmatpush1.bf16.msra.mxu0 0
    %193 = vmatprep.mubr.bf16.mxu0 0
    %194 = vmatmul.mubr.bf16.gmra.mrb[0].mxu0 %v118
    %v195 = vpop.f32.mrb[0].mxu0
    %v196 = vadd.f32 0.0, %v195
    %v197 = vpop.f32.mrb[0].mxu0
    %v198 = vpop.f32.mrb[0].mxu0
    %v199 = vpop.f32.mrb[0].mxu0
    %200 = vdwg.mxu0
    %v201 = vld [vmem:[#allocation8] sm:$0xff]
    %v202 = vld [vmem:[#allocation8 + $0x8] sm:$0xf]
    %v203 = vld [vmem:[#allocation8 + $0xc] sm:$0xff]
    %v204 = vld [vmem:[#allocation8 + $0x14] sm:$0xf]
    %v205 = vld [vmem:[#allocation8 + $0x18] sm:$0xff]
    %v206 = vld [vmem:[#allocation8 + $0x20] sm:$0xf]
    %v207 = vld [vmem:[#allocation8 + $0x24] sm:$0xff]
    %v208 = vld [vmem:[#allocation8 + $0x2c] sm:$0xf]
    %v209 = vld [vmem:[#allocation8 + $0x30] sm:$0xff]
    %v210 = vld [vmem:[#allocation8 + $0x38] sm:$0xf]
    %v211 = vld [vmem:[#allocation8 + $0x3c] sm:$0xff]
    %v212 = vld [vmem:[#allocation8 + $0x44] sm:$0xf]
    %v213 = vld [vmem:[#allocation8 + $0x48] sm:$0xff]
    %v214 = vld [vmem:[#allocation8 + $0x50] sm:$0xf]
    %v215 = vld [vmem:[#allocation8 + $0x54] sm:$0xff]
    %v216 = vld [vmem:[#allocation8 + $0x5c] sm:$0xf]
    %v233 = vunpack.c.l.b16 %v201
    %v234 = vunpack.c.h.b16 %v201
    %v235 = vunpack.c.l.b16 %v202
    %v236 = vunpack.c.l.b16 %v203
    %v237 = vunpack.c.h.b16 %v203
    %v238 = vunpack.c.l.b16 %v204
    %v239 = vunpack.c.l.b16 %v205
    %v240 = vunpack.c.h.b16 %v205
    %v241 = vunpack.c.l.b16 %v206
    %v242 = vunpack.c.l.b16 %v207
    %v243 = vunpack.c.h.b16 %v207
    %v244 = vunpack.c.l.b16 %v208
    %v245 = vunpack.c.l.b16 %v209
    %v246 = vunpack.c.h.b16 %v209
    %v247 = vunpack.c.l.b16 %v210
    %v248 = vunpack.c.l.b16 %v211
    %v249 = vunpack.c.h.b16 %v211
    %v250 = vunpack.c.l.b16 %v212
    %v251 = vunpack.c.l.b16 %v213
    %v252 = vunpack.c.h.b16 %v213
    %v253 = vunpack.c.l.b16 %v214
    %v254 = vunpack.c.l.b16 %v215
    %v255 = vunpack.c.h.b16 %v215
    %v256 = vunpack.c.l.b16 %v216
    %v257 = vpack.c.b16 %v236, %v233
    %v258 = vpack.c.b16 %v237, %v234
    %v259 = vpack.c.b16 %v238, %v235
    %v260 = vpack.c.b16 %v242, %v239
    %v261 = vpack.c.b16 %v243, %v240
    %v262 = vpack.c.b16 %v244, %v241
    %v263 = vpack.c.b16 %v248, %v245
    %v264 = vpack.c.b16 %v249, %v246
    %v265 = vpack.c.b16 %v250, %v247
    %v266 = vpack.c.b16 %v254, %v251
    %v267 = vpack.c.b16 %v255, %v252
    %v268 = vpack.c.b16 %v256, %v253
    %vm281 = vcmask 523264
    %v283 = vsel %vm281, %v95, 0
    %285 = vmatprep.subr.bf16.mxu0 %v258
    %286 = vmatpush1.bf16.msra.mxu0 %v257
    %287 = vmatprep.subr.bf16.mxu0 %v261
    %288 = vmatpush1.bf16.msra.mxu0 %v260
    %289 = vmatprep.subr.bf16.mxu0 %v264
    %290 = vmatpush1.bf16.msra.mxu0 %v263
    %291 = vmatprep.subr.bf16.mxu0 %v267
    %292 = vmatpush1.bf16.msra.mxu0 %v266
    %293 = vmatprep.subr.bf16.mxu0 0
    %294 = vmatpush1.bf16.msra.mxu0 0
    %295 = vmatprep.subr.bf16.mxu0 0
    %296 = vmatpush1.bf16.msra.mxu0 0
    %297 = vmatprep.subr.bf16.mxu0 0
    %298 = vmatpush1.bf16.msra.mxu0 0
    %299 = vmatprep.subr.bf16.mxu0 0
    %300 = vmatpush1.bf16.msra.mxu0 0
    %301 = vmatprep.subr.bf16.mxu0 0
    %302 = vmatpush1.bf16.msra.mxu0 0
    %303 = vmatprep.subr.bf16.mxu0 0
    %304 = vmatpush1.bf16.msra.mxu0 0
    %305 = vmatprep.subr.bf16.mxu0 0
    %306 = vmatpush1.bf16.msra.mxu0 0
    %307 = vmatprep.subr.bf16.mxu0 0
    %308 = vmatpush1.bf16.msra.mxu0 0
    %309 = vmatprep.subr.bf16.mxu0 0
    %310 = vmatpush1.bf16.msra.mxu0 0
    %311 = vmatprep.subr.bf16.mxu0 0
    %312 = vmatpush1.bf16.msra.mxu0 0
    %313 = vmatprep.subr.bf16.mxu0 0
    %314 = vmatpush1.bf16.msra.mxu0 0
    %315 = vmatprep.subr.bf16.mxu0 0
    %316 = vmatpush1.bf16.msra.mxu0 0
    %317 = vmatprep.mubr.bf16.mxu0 0
    %318 = vmatmul.mubr.bf16.gmra.mrb[0].mxu0 %v283
    %v319 = vpop.f32.mrb[0].mxu0
    %v320 = vadd.f32 0.0, %v319
    %v321 = vpop.f32.mrb[0].mxu0
    %v322 = vadd.f32 0.0, %v321
    %v323 = vpop.f32.mrb[0].mxu0
    %v324 = vpop.f32.mrb[0].mxu0
    %325 = vdwg.mxu0
    %326 = vmatprep.subr.bf16.mxu0 0
    %327 = vmatpush1.bf16.msra.mxu0 %v259
    %328 = vmatprep.subr.bf16.mxu0 0
    %329 = vmatpush1.bf16.msra.mxu0 %v262
    %330 = vmatprep.subr.bf16.mxu0 0
    %331 = vmatpush1.bf16.msra.mxu0 %v265
    %332 = vmatprep.subr.bf16.mxu0 0
    %333 = vmatpush1.bf16.msra.mxu0 %v268
    %334 = vmatprep.subr.bf16.mxu0 0
    %335 = vmatpush1.bf16.msra.mxu0 0
    %336 = vmatprep.subr.bf16.mxu0 0
    %337 = vmatpush1.bf16.msra.mxu0 0
    %338 = vmatprep.subr.bf16.mxu0 0
    %339 = vmatpush1.bf16.msra.mxu0 0
    %340 = vmatprep.subr.bf16.mxu0 0
    %341 = vmatpush1.bf16.msra.mxu0 0
    %342 = vmatprep.subr.bf16.mxu0 0
    %343 = vmatpush1.bf16.msra.mxu0 0
    %344 = vmatprep.subr.bf16.mxu0 0
    %345 = vmatpush1.bf16.msra.mxu0 0
    %346 = vmatprep.subr.bf16.mxu0 0
    %347 = vmatpush1.bf16.msra.mxu0 0
    %348 = vmatprep.subr.bf16.mxu0 0
    %349 = vmatpush1.bf16.msra.mxu0 0
    %350 = vmatprep.subr.bf16.mxu0 0
    %351 = vmatpush1.bf16.msra.mxu0 0
    %352 = vmatprep.subr.bf16.mxu0 0
    %353 = vmatpush1.bf16.msra.mxu0 0
    %354 = vmatprep.subr.bf16.mxu0 0
    %355 = vmatpush1.bf16.msra.mxu0 0
    %356 = vmatprep.subr.bf16.mxu0 0
    %357 = vmatpush1.bf16.msra.mxu0 0
    %358 = vmatprep.mubr.bf16.mxu0 0
    %359 = vmatmul.mubr.bf16.gmra.mrb[0].mxu0 %v283
    %v360 = vpop.f32.mrb[0].mxu0
    %v361 = vadd.f32 0.0, %v360
    %v362 = vpop.f32.mrb[0].mxu0
    %v363 = vpop.f32.mrb[0].mxu0
    %v364 = vpop.f32.mrb[0].mxu0
    %365 = vdwg.mxu0
    %v366 = vld [vmem:[%s5] sm:$0xff]
    %v367 = vadd.f32 %v155, %v320
    %v368 = vlaneseq
    %v369 = vshrl.u32 %v368, 7
    %v370 = vsub.s32 0, %v369
    %v371 = vrot.slane %v366, %v370
    %v372 = vadd.f32 %v367, %v371
    %v373 = vxor.u32 %v372, 2147483648
    %v374 = vmul.f32 %v373, 1.442695
    %v375 = vpow.pop %v374
    %v376 = vadd.f32 %v375, 1.0
    %v377 = vrcp.pop %v376
    %v378 = vmul.f32 1.0, %v377
    %v379 = vadd.f32 %v157, %v322
    %v380 = vlaneseq
    %v381 = vshrl.u32 %v380, 7
    %v382 = vsub.s32 1, %v381
    %v383 = vrot.slane %v366, %v382
    %v384 = vadd.f32 %v379, %v383
    %v385 = vxor.u32 %v384, 2147483648
    %v386 = vmul.f32 %v385, 1.442695
    %v387 = vpow.pop %v386
    %v388 = vadd.f32 %v387, 1.0
    %v389 = vrcp.pop %v388
    %v390 = vmul.f32 1.0, %v389
    %v391 = vlaneseq
    %v392 = vshrl.u32 %v391, 7
    %v393 = vsub.s32 2, %v392
    %v394 = vrot.slane %v366, %v393
    %v395 = vadd.f32 %v196, %v394
    %v396 = vlaneseq
    %v397 = vshrl.u32 %v396, 7
    %v398 = vsub.s32 3, %v397
    %v399 = vrot.slane %v366, %v398
    %v400 = vadd.f32 %v361, %v399
    %v401 = vmul.f32 %v378, %v400
    %v402 = vadd.f32 %v395, %v401
    %v403 = vtanh.pop %v402
    %v404 = vsub.f32 1.0, %v390
    %v405 = vmul.f32 %v404, %v403
    %v406 = vmul.f32 %v390, %v94
    %v407 = vadd.f32 %v405, %v406
    %v408 = vpack.c.bf16 %v407, %v407
    %v409 = vld [vmem:[#allocation10] sm:$0xf]
    %v410 = vld [vmem:[#allocation10 + $0x4] sm:$0xf]
    %v411 = vld [vmem:[#allocation10 + $0x8] sm:$0xf]
    %v412 = vld [vmem:[#allocation10 + $0xc] sm:$0xf]
    %v413 = vld [vmem:[#allocation10 + $0x10] sm:$0xf]
    %v414 = vld [vmem:[#allocation10 + $0x14] sm:$0xf]
    %v415 = vld [vmem:[#allocation10 + $0x18] sm:$0xf]
    %v416 = vld [vmem:[#allocation10 + $0x1c] sm:$0xf]
    %v417 = vlaneseq
    %v418 = vshrl.u32 %v417, 7
    %v419 = vsub.s32 4, %v418
    %v420 = vrot.slane %v366, %v419
    %v429 = vunpack.c.l.b16 %v409
    %v430 = vunpack.c.l.b16 %v410
    %v431 = vunpack.c.l.b16 %v411
    %v432 = vunpack.c.l.b16 %v412
    %v433 = vunpack.c.l.b16 %v413
    %v434 = vunpack.c.l.b16 %v414
    %v435 = vunpack.c.l.b16 %v415
    %v436 = vunpack.c.l.b16 %v416
    %v437 = vpack.c.b16 %v430, %v429
    %v438 = vpack.c.b16 %v432, %v431
    %v439 = vpack.c.b16 %v434, %v433
    %v440 = vpack.c.b16 %v436, %v435
    %v446 = vsel %vm281, %v408, 0
    %448 = vmatprep.subr.bf16.mxu0 0
    %449 = vmatpush1.bf16.msra.mxu0 %v437
    %450 = vmatprep.subr.bf16.mxu0 0
    %451 = vmatpush1.bf16.msra.mxu0 %v438
    %452 = vmatprep.subr.bf16.mxu0 0
    %453 = vmatpush1.bf16.msra.mxu0 %v439
    %454 = vmatprep.subr.bf16.mxu0 0
    %455 = vmatpush1.bf16.msra.mxu0 %v440
    %456 = vmatprep.subr.bf16.mxu0 0
    %457 = vmatpush1.bf16.msra.mxu0 0
    %458 = vmatprep.subr.bf16.mxu0 0
    %459 = vmatpush1.bf16.msra.mxu0 0
    %460 = vmatprep.subr.bf16.mxu0 0
    %461 = vmatpush1.bf16.msra.mxu0 0
    %462 = vmatprep.subr.bf16.mxu0 0
    %463 = vmatpush1.bf16.msra.mxu0 0
    %464 = vmatprep.subr.bf16.mxu0 0
    %465 = vmatpush1.bf16.msra.mxu0 0
    %466 = vmatprep.subr.bf16.mxu0 0
    %467 = vmatpush1.bf16.msra.mxu0 0
    %468 = vmatprep.subr.bf16.mxu0 0
    %469 = vmatpush1.bf16.msra.mxu0 0
    %470 = vmatprep.subr.bf16.mxu0 0
    %471 = vmatpush1.bf16.msra.mxu0 0
    %472 = vmatprep.subr.bf16.mxu0 0
    %473 = vmatpush1.bf16.msra.mxu0 0
    %474 = vmatprep.subr.bf16.mxu0 0
    %475 = vmatpush1.bf16.msra.mxu0 0
    %476 = vmatprep.subr.bf16.mxu0 0
    %477 = vmatpush1.bf16.msra.mxu0 0
    %478 = vmatprep.subr.bf16.mxu0 0
    %479 = vmatpush1.bf16.msra.mxu0 0
    %480 = vmatprep.mubr.bf16.mxu0 0
    %481 = vmatmul.mubr.bf16.gmra.mrb[0].mxu0 %v446
    %v482 = vpop.f32.mrb[0].mxu0
    %v483 = vadd.f32 %v420, %v482
    %v484 = vpop.f32.mrb[0].mxu0
    %v485 = vpop.f32.mrb[0].mxu0
    %v486 = vpop.f32.mrb[0].mxu0
    %487 = vdwg.mxu0
    %vm488 = vcmask 1043456
    %v489 = vsel %vm488, %v483, -inf
    %490 = vmax.xlane.f32.xlu0 %v489
    %v491 = vpop.xlane.xlu0 %490
    %v492 = vsub.f32 %v483, %v491
    %v493 = vmul.f32 %v492, 1.442695
    %v494 = vpow.pop %v493
    %v495 = vsel %vm488, %v494, 0.0
    %496 = vadd.xlane.f32.xlu0 %v495
    %v497 = vpop.xlane.xlu0 %496
    %v498 = vrcp.pop %v497
    %v499 = vmul.f32 %v494, %v498
    %500 = vst [vmem:[#allocation11] sm:$0xf] %v499
    %vm501 = vcmask 519168
    %502 = vst.msk [vmem:[#allocation12] sm:$0xf] %vm501, %v407
    // Predicated region
    $region46: #{tpu_custom_call.1} parent=1 // pred_check
      _
    $region47: #{tpu_custom_call.1} parent=1 // pred_check_branch
      %504 = sbr.rel (0) target = $region49
    $region48: #{tpu_custom_call.1} parent=1 // pred_region
      %s506 = ssub.s32 64, 64
      %507 = vsyncadd [#allocation4], %s506
      %s509 = sshll.u32 [#allocation11], 4
      %s510 = int_to_ptr.vmem [resolvable:$true] %s509
      %512 = dma.vmem_to_hbm [thread:$0]  %s510, 64, %s6, [#allocation4]
    $region49: #{tpu_custom_call.1} parent=1 // pred_fallthru
      _
    // Predicated region
    $region50: #{tpu_custom_call.1} parent=1 // pred_check
      _
    $region51: #{tpu_custom_call.1} parent=1 // pred_check_branch
      %514 = sbr.rel (0) target = $region53
    $region52: #{tpu_custom_call.1} parent=1 // pred_region
      %s516 = ssub.s32 64, 64
      %517 = vsyncadd [#allocation13], %s516
      %s519 = sshll.u32 [#allocation12], 4
      %s520 = int_to_ptr.vmem [resolvable:$true] %s519
      %522 = dma.vmem_to_hbm [thread:$0]  %s520, 64, %s7, [#allocation13]
    $region53: #{tpu_custom_call.1} parent=1 // pred_fallthru
      _
    // Predicated region
    $region54: #{tpu_custom_call.1} parent=1 // pred_check
      _
    $region55: #{tpu_custom_call.1} parent=1 // pred_check_branch
      %524 = sbr.rel (0) target = $region57
    $region56: #{tpu_custom_call.1} parent=1 // pred_region
      %525 = dma.done [#allocation4], 64
    $region57: #{tpu_custom_call.1} parent=1 // pred_fallthru
      _
    // Predicated region
    $region58: #{tpu_custom_call.1} parent=1 // pred_check
      _
    $region59: #{tpu_custom_call.1} parent=1 // pred_check_branch
      %527 = sbr.rel (0) target = $region61
    $region60: #{tpu_custom_call.1} parent=1 // pred_region
      %528 = dma.done [#allocation13], 64
    $region61: #{tpu_custom_call.1} parent=1 // pred_fallthru
      _
    %529 = vsyncpa [#allocation3], 1
    %530 = vsyncpa [#allocation6], 1
    %531 = vsyncpa [#allocation9], 1
    %532 = vsyncpa [#allocation4], 1
    %533 = vsyncpa [#allocation13], 1

</llo_original>
